<compile_context>
chip_gen: v7x
topology: tpu7x:2x2x1
jax: 0.10.0
libtpu: 0.0.40
codegen_flags: <defaults>
</compile_context>

<pallas_src>
import functools

import jax
import jax.numpy as jnp
from jax.experimental import pallas as pl
from jax.experimental.pallas import tpu as pltpu


# ----------------------------------------------------------------------------
# Pallas kernel: whole 3-layer MLP fused. Matmuls on MXU (operands in the
# weights' dtype, f32 accumulation), ReLU on VPU. Batch is sub-tiled in-kernel
# so intermediate activations stay in vregs.
# ----------------------------------------------------------------------------
def joint_mlp_kernel(x_ref, z_ref, w1x_ref, w1z_ref, b1_ref,
                     w2_ref, b2_ref, w3_ref, b3_ref, o_ref, *, chunk):
    cdt = w1x_ref.dtype                       # matmul operand dtype
    n_chunks = x_ref.shape[0] // chunk        # static

    def body(c, carry):
        r0 = pl.multiple_of(c * chunk, chunk)

        # Layer 1: cat(x, z) @ W1 done as two dots (concat never materialized).
        xc = x_ref[pl.ds(r0, chunk), :].astype(cdt)
        zc = z_ref[pl.ds(r0, chunk), :].astype(cdt)
        h1 = (jnp.dot(xc, w1x_ref[...], preferred_element_type=jnp.float32)
              + jnp.dot(zc, w1z_ref[...], preferred_element_type=jnp.float32)
              + b1_ref[...])
        h1 = jnp.maximum(h1, 0.0)

        # Layer 2: Linear + ReLU.
        h2 = (jnp.dot(h1.astype(cdt), w2_ref[...],
                      preferred_element_type=jnp.float32) + b2_ref[...])
        h2 = jnp.maximum(h2, 0.0)

        # Output layer: Linear (output='linear' -> no activation).
        y = (jnp.dot(h2.astype(cdt), w3_ref[...],
                     preferred_element_type=jnp.float32) + b3_ref[...])
        o_ref[pl.ds(r0, chunk), :] = y.astype(o_ref.dtype)
        return carry

    jax.lax.fori_loop(0, n_chunks, body, None, unroll=True)


# ----------------------------------------------------------------------------
# Wrapper: parameter plumbing, batch tiling, pallas_call.
# ----------------------------------------------------------------------------
@functools.partial(jax.jit, static_argnames=("block_b", "matmul_dtype"))
def joint_relu_mlp(x, z, params, *, block_b=512, matmul_dtype=jnp.bfloat16):
    B, Dx = x.shape
    Bz, Dz = z.shape
    assert Bz == B, "batch mismatch between input and z"
    w1, b1, w2, b2, w3, b3 = params            # weights stored as (in, out)
    D0, D1 = w1.shape
    D2 = w2.shape[1]
    D3 = w3.shape[1]
    assert D0 == Dx + Dz, "layer_dims[0] must equal Dx + Dz"

    # Batch tile: multiple of 8 sublanes, clamped to the 8-rounded batch.
    block_b = max(8, (min(int(block_b), pl.cdiv(B, 8) * 8) // 8) * 8)
    # In-kernel sub-tile (largest of these that divides block_b).
    chunk = next(c for c in (256, 128, 64, 32, 16, 8) if block_b % c == 0)
    grid = (pl.cdiv(B, block_b),)              # partial tail tile is masked

    # Split W1 once in the wrapper (tiny copy) so the kernel consumes x and z
    # directly; weights cast here, activations cast inside the kernel.
    cdt = jnp.dtype(matmul_dtype)
    w1x = w1[:Dx].astype(cdt)
    w1z = w1[Dx:].astype(cdt)
    w2c = w2.astype(cdt)
    w3c = w3.astype(cdt)
    b1r = b1.reshape(1, D1).astype(jnp.float32)
    b2r = b2.reshape(1, D2).astype(jnp.float32)
    b3r = b3.reshape(1, D3).astype(jnp.float32)

    operands = (x, z, w1x, w1z, b1r, w2c, b2r, w3c, b3r)
    out_dtype = x.dtype
    bytes_accessed = int(sum(a.size * a.dtype.itemsize for a in operands)
                         + B * D3 * jnp.dtype(out_dtype).itemsize)
    flops = int(2 * B * (D0 * D1 + D1 * D2 + D2 * D3))

    rep = lambda shape: pl.BlockSpec(shape, lambda i: (0, 0))  # replicated param

    out = pl.pallas_call(
        functools.partial(joint_mlp_kernel, chunk=chunk),
        out_shape=jax.ShapeDtypeStruct((B, D3), out_dtype),
        grid_spec=pl.GridSpec(
            grid=grid,
            in_specs=[
                pl.BlockSpec((block_b, Dx), lambda i: (i, 0)),   # x (batch-tiled)
                pl.BlockSpec((block_b, Dz), lambda i: (i, 0)),   # z (batch-tiled)
                rep((Dx, D1)), rep((Dz, D1)), rep((1, D1)),      # W1[:Dx], W1[Dx:], b1
                rep((D1, D2)), rep((1, D2)),                     # W2, b2
                rep((D2, D3)), rep((1, D3)),                     # W3, b3
            ],
            out_specs=pl.BlockSpec((block_b, D3), lambda i: (i, 0)),
        ),
        compiler_params=pltpu.CompilerParams(
            dimension_semantics=("parallel",),
            vmem_limit_bytes=32 * 1024 * 1024,
        ),
        cost_estimate=pl.CostEstimate(
            flops=flops, transcendentals=0, bytes_accessed=bytes_accessed),
    )(*operands)
    return out


# ----------------------------------------------------------------------------
# Deterministic parameter init (mimics nn.Linear's uniform(-1/sqrt(fan_in), ..)).
# Weights kept in (in, out) layout == transpose of PyTorch's (out, in).
# ----------------------------------------------------------------------------
def init_params(key, layer_dims):
    params = []
    dims = list(layer_dims)
    for d_in, d_out in zip(dims[:-1], dims[1:]):
        key, kw, kb = jax.random.split(key, 3)
        bound = 1.0 / jnp.sqrt(d_in)
        w = jax.random.uniform(kw, (d_in, d_out), jnp.float32, -bound, bound)
        b = jax.random.uniform(kb, (d_out,), jnp.float32, -bound, bound)
        params.extend([w, b])
    return tuple(params)


def reference_forward(x, z, params):
    w1, b1, w2, b2, w3, b3 = params
    h = jnp.concatenate([x, z], axis=1)
    h = jnp.maximum(h @ w1 + b1, 0.0)
    h = jnp.maximum(h @ w2 + b2, 0.0)
    return h @ w3 + b3


if __name__ == "__main__":
    # Small shapes consistent with Joint_ReLU_MLP:
    #   input: (B, Dx), z: (B, Dz), layer_dims = [Dx + Dz, 64, 32, 8]
    B, Dx, Dz = 20, 16, 16
    layer_dims = [Dx + Dz, 64, 32, 8]

    key = jax.random.PRNGKey(0)
    kx, kz, kp = jax.random.split(key, 3)
    x = jax.random.normal(kx, (B, Dx), jnp.float32)
    z = jax.random.normal(kz, (B, Dz), jnp.float32)
    params = init_params(kp, layer_dims)

    ref = reference_forward(x, z, params)

    # Exact f32-operand path (single clamped batch tile).
    out_f32 = jax.block_until_ready(
        joint_relu_mlp(x, z, params, matmul_dtype=jnp.float32))
    assert out_f32.shape == (B, layer_dims[-1])
    assert jnp.allclose(out_f32, ref, atol=1e-5, rtol=1e-5), "f32 mismatch vs reference"

    # Default path: bf16 operands + f32 accumulation, multi-step grid with a
    # partial (masked) final tile: block_b=8, B=20 -> grid=(3,).
    out_bf16 = jax.block_until_ready(joint_relu_mlp(x, z, params, block_b=8))
    assert out_bf16.shape == (B, layer_dims[-1])
    assert jnp.allclose(out_bf16, ref, atol=1e-1, rtol=1e-1), "bf16 mismatch vs reference"

    print("KERNEL_OK")
</pallas_src>

<mosaic_0001>
module attributes {stable_mosaic.version = 11 : i64} {
  func.func @joint_mlp_kernel(%arg0: i32, %arg1: memref<24x16xf32, #tpu.memory_space<vmem>>, %arg2: memref<24x16xf32, #tpu.memory_space<vmem>>, %arg3: memref<16x64xf32, #tpu.memory_space<vmem>>, %arg4: memref<16x64xf32, #tpu.memory_space<vmem>>, %arg5: memref<1x64xf32, #tpu.memory_space<vmem>>, %arg6: memref<64x32xf32, #tpu.memory_space<vmem>>, %arg7: memref<1x32xf32, #tpu.memory_space<vmem>>, %arg8: memref<32x8xf32, #tpu.memory_space<vmem>>, %arg9: memref<1x8xf32, #tpu.memory_space<vmem>>, %arg10: memref<24x8xf32, #tpu.memory_space<vmem>>) attributes {dimension_semantics = [#tpu.dimension_semantics<parallel>], iteration_bounds = array<i64: 1>, scalar_prefetch = 0 : i64, scratch_operands = 0 : i64, tpu.core_type = #tpu.core_type<tc>, window_params = [{transform_indices = @transform_0, window_bounds = array<i64: 24, 16>}, {transform_indices = @transform_1, window_bounds = array<i64: 24, 16>}, {pipeline_mode = #tpu.pipeline_mode<synchronous>, transform_indices = @transform_2, window_bounds = array<i64: 16, 64>}, {pipeline_mode = #tpu.pipeline_mode<synchronous>, transform_indices = @transform_3, window_bounds = array<i64: 16, 64>}, {pipeline_mode = #tpu.pipeline_mode<synchronous>, transform_indices = @transform_4, window_bounds = array<i64: 1, 64>}, {pipeline_mode = #tpu.pipeline_mode<synchronous>, transform_indices = @transform_5, window_bounds = array<i64: 64, 32>}, {pipeline_mode = #tpu.pipeline_mode<synchronous>, transform_indices = @transform_6, window_bounds = array<i64: 1, 32>}, {pipeline_mode = #tpu.pipeline_mode<synchronous>, transform_indices = @transform_7, window_bounds = array<i64: 32, 8>}, {pipeline_mode = #tpu.pipeline_mode<synchronous>, transform_indices = @transform_8, window_bounds = array<i64: 1, 8>}, {transform_indices = @transform_9, window_bounds = array<i64: 24, 8>}]} {
    %c0_i32 = arith.constant 0 : i32
    %c8_i32 = arith.constant 8 : i32
    %0 = arith.muli %c0_i32, %c8_i32 : i32
    %1 = tpu.assume_multiple %0, 8 : i32
    %2 = arith.index_cast %1 : i32 to index
    %c0 = arith.constant 0 : index
    %3 = vector.load %arg1[%2, %c0] : memref<24x16xf32, #tpu.memory_space<vmem>>, vector<8x16xf32>
    %4 = arith.index_cast %1 : i32 to index
    %c0_0 = arith.constant 0 : index
    %5 = vector.load %arg2[%4, %c0_0] : memref<24x16xf32, #tpu.memory_space<vmem>>, vector<8x16xf32>
    %c0_1 = arith.constant 0 : index
    %c0_2 = arith.constant 0 : index
    %6 = vector.load %arg3[%c0_1, %c0_2] : memref<16x64xf32, #tpu.memory_space<vmem>>, vector<16x64xf32>
    %cst = arith.constant dense<0.000000e+00> : vector<8x64xf32>
    %7 = tpu.matmul %3, %6, %cst {dimension_numbers = #tpu.dot_dimension_numbers<[1], [0], [0], [1], [0, 0, 1, 1], [], []>} : vector<8x16xf32>, vector<16x64xf32>, vector<8x64xf32> -> vector<8x64xf32>
    %c0_3 = arith.constant 0 : index
    %c0_4 = arith.constant 0 : index
    %8 = vector.load %arg4[%c0_3, %c0_4] : memref<16x64xf32, #tpu.memory_space<vmem>>, vector<16x64xf32>
    %cst_5 = arith.constant dense<0.000000e+00> : vector<8x64xf32>
    %9 = tpu.matmul %5, %8, %cst_5 {dimension_numbers = #tpu.dot_dimension_numbers<[1], [0], [0], [1], [0, 0, 1, 1], [], []>} : vector<8x16xf32>, vector<16x64xf32>, vector<8x64xf32> -> vector<8x64xf32>
    %10 = arith.addf %7, %9 : vector<8x64xf32>
    %c0_6 = arith.constant 0 : index
    %c0_7 = arith.constant 0 : index
    %11 = vector.load %arg5[%c0_6, %c0_7] : memref<1x64xf32, #tpu.memory_space<vmem>>, vector<1x64xf32>
    %12 = vector.broadcast %11 : vector<1x64xf32> to vector<8x64xf32>
    %13 = arith.addf %10, %12 : vector<8x64xf32>
    %cst_8 = arith.constant 0.000000e+00 : f32
    %14 = vector.broadcast %cst_8 : f32 to vector<8x64xf32>
    %15 = arith.maximumf %13, %14 : vector<8x64xf32>
    %c0_9 = arith.constant 0 : index
    %c0_10 = arith.constant 0 : index
    %16 = vector.load %arg6[%c0_9, %c0_10] : memref<64x32xf32, #tpu.memory_space<vmem>>, vector<64x32xf32>
    %cst_11 = arith.constant dense<0.000000e+00> : vector<8x32xf32>
    %17 = tpu.matmul %15, %16, %cst_11 {dimension_numbers = #tpu.dot_dimension_numbers<[1], [0], [0], [1], [0, 0, 1, 1], [], []>} : vector<8x64xf32>, vector<64x32xf32>, vector<8x32xf32> -> vector<8x32xf32>
    %c0_12 = arith.constant 0 : index
    %c0_13 = arith.constant 0 : index
    %18 = vector.load %arg7[%c0_12, %c0_13] : memref<1x32xf32, #tpu.memory_space<vmem>>, vector<1x32xf32>
    %19 = vector.broadcast %18 : vector<1x32xf32> to vector<8x32xf32>
    %20 = arith.addf %17, %19 : vector<8x32xf32>
    %cst_14 = arith.constant 0.000000e+00 : f32
    %21 = vector.broadcast %cst_14 : f32 to vector<8x32xf32>
    %22 = arith.maximumf %20, %21 : vector<8x32xf32>
    %c0_15 = arith.constant 0 : index
    %c0_16 = arith.constant 0 : index
    %23 = vector.load %arg8[%c0_15, %c0_16] : memref<32x8xf32, #tpu.memory_space<vmem>>, vector<32x8xf32>
    %cst_17 = arith.constant dense<0.000000e+00> : vector<8x8xf32>
    %24 = tpu.matmul %22, %23, %cst_17 {dimension_numbers = #tpu.dot_dimension_numbers<[1], [0], [0], [1], [0, 0, 1, 1], [], []>} : vector<8x32xf32>, vector<32x8xf32>, vector<8x8xf32> -> vector<8x8xf32>
    %c0_18 = arith.constant 0 : index
    %c0_19 = arith.constant 0 : index
    %25 = vector.load %arg9[%c0_18, %c0_19] : memref<1x8xf32, #tpu.memory_space<vmem>>, vector<1x8xf32>
    %26 = vector.broadcast %25 : vector<1x8xf32> to vector<8x8xf32>
    %27 = arith.addf %24, %26 : vector<8x8xf32>
    %28 = arith.index_cast %1 : i32 to index
    %c0_20 = arith.constant 0 : index
    %29 = vector.load %arg10[%28, %c0_20] : memref<24x8xf32, #tpu.memory_space<vmem>>, vector<8x8xf32>
    tpu.vector_store %arg10[%28, %c0_20], %27 {strides = array<i32>} : memref<24x8xf32, #tpu.memory_space<vmem>>, vector<8x8xf32>,
    %c1_i32 = arith.constant 1 : i32
    %c8_i32_21 = arith.constant 8 : i32
    %30 = arith.muli %c1_i32, %c8_i32_21 : i32
    %31 = tpu.assume_multiple %30, 8 : i32
    %32 = arith.index_cast %31 : i32 to index
    %c0_22 = arith.constant 0 : index
    %33 = vector.load %arg1[%32, %c0_22] : memref<24x16xf32, #tpu.memory_space<vmem>>, vector<8x16xf32>
    %34 = arith.index_cast %31 : i32 to index
    %c0_23 = arith.constant 0 : index
    %35 = vector.load %arg2[%34, %c0_23] : memref<24x16xf32, #tpu.memory_space<vmem>>, vector<8x16xf32>
    %c0_24 = arith.constant 0 : index
    %c0_25 = arith.constant 0 : index
    %36 = vector.load %arg3[%c0_24, %c0_25] : memref<16x64xf32, #tpu.memory_space<vmem>>, vector<16x64xf32>
    %cst_26 = arith.constant dense<0.000000e+00> : vector<8x64xf32>
    %37 = tpu.matmul %33, %36, %cst_26 {dimension_numbers = #tpu.dot_dimension_numbers<[1], [0], [0], [1], [0, 0, 1, 1], [], []>} : vector<8x16xf32>, vector<16x64xf32>, vector<8x64xf32> -> vector<8x64xf32>
    %c0_27 = arith.constant 0 : index
    %c0_28 = arith.constant 0 : index
    %38 = vector.load %arg4[%c0_27, %c0_28] : memref<16x64xf32, #tpu.memory_space<vmem>>, vector<16x64xf32>
    %cst_29 = arith.constant dense<0.000000e+00> : vector<8x64xf32>
    %39 = tpu.matmul %35, %38, %cst_29 {dimension_numbers = #tpu.dot_dimension_numbers<[1], [0], [0], [1], [0, 0, 1, 1], [], []>} : vector<8x16xf32>, vector<16x64xf32>, vector<8x64xf32> -> vector<8x64xf32>
    %40 = arith.addf %37, %39 : vector<8x64xf32>
    %c0_30 = arith.constant 0 : index
    %c0_31 = arith.constant 0 : index
    %41 = vector.load %arg5[%c0_30, %c0_31] : memref<1x64xf32, #tpu.memory_space<vmem>>, vector<1x64xf32>
    %42 = vector.broadcast %41 : vector<1x64xf32> to vector<8x64xf32>
    %43 = arith.addf %40, %42 : vector<8x64xf32>
    %cst_32 = arith.constant 0.000000e+00 : f32
    %44 = vector.broadcast %cst_32 : f32 to vector<8x64xf32>
    %45 = arith.maximumf %43, %44 : vector<8x64xf32>
    %c0_33 = arith.constant 0 : index
    %c0_34 = arith.constant 0 : index
    %46 = vector.load %arg6[%c0_33, %c0_34] : memref<64x32xf32, #tpu.memory_space<vmem>>, vector<64x32xf32>
    %cst_35 = arith.constant dense<0.000000e+00> : vector<8x32xf32>
    %47 = tpu.matmul %45, %46, %cst_35 {dimension_numbers = #tpu.dot_dimension_numbers<[1], [0], [0], [1], [0, 0, 1, 1], [], []>} : vector<8x64xf32>, vector<64x32xf32>, vector<8x32xf32> -> vector<8x32xf32>
    %c0_36 = arith.constant 0 : index
    %c0_37 = arith.constant 0 : index
    %48 = vector.load %arg7[%c0_36, %c0_37] : memref<1x32xf32, #tpu.memory_space<vmem>>, vector<1x32xf32>
    %49 = vector.broadcast %48 : vector<1x32xf32> to vector<8x32xf32>
    %50 = arith.addf %47, %49 : vector<8x32xf32>
    %cst_38 = arith.constant 0.000000e+00 : f32
    %51 = vector.broadcast %cst_38 : f32 to vector<8x32xf32>
    %52 = arith.maximumf %50, %51 : vector<8x32xf32>
    %c0_39 = arith.constant 0 : index
    %c0_40 = arith.constant 0 : index
    %53 = vector.load %arg8[%c0_39, %c0_40] : memref<32x8xf32, #tpu.memory_space<vmem>>, vector<32x8xf32>
    %cst_41 = arith.constant dense<0.000000e+00> : vector<8x8xf32>
    %54 = tpu.matmul %52, %53, %cst_41 {dimension_numbers = #tpu.dot_dimension_numbers<[1], [0], [0], [1], [0, 0, 1, 1], [], []>} : vector<8x32xf32>, vector<32x8xf32>, vector<8x8xf32> -> vector<8x8xf32>
    %c0_42 = arith.constant 0 : index
    %c0_43 = arith.constant 0 : index
    %55 = vector.load %arg9[%c0_42, %c0_43] : memref<1x8xf32, #tpu.memory_space<vmem>>, vector<1x8xf32>
    %56 = vector.broadcast %55 : vector<1x8xf32> to vector<8x8xf32>
    %57 = arith.addf %54, %56 : vector<8x8xf32>
    %58 = arith.index_cast %31 : i32 to index
    %c0_44 = arith.constant 0 : index
    %59 = vector.load %arg10[%58, %c0_44] : memref<24x8xf32, #tpu.memory_space<vmem>>, vector<8x8xf32>
    tpu.vector_store %arg10[%58, %c0_44], %57 {strides = array<i32>} : memref<24x8xf32, #tpu.memory_space<vmem>>, vector<8x8xf32>,
    %c2_i32 = arith.constant 2 : i32
    %c8_i32_45 = arith.constant 8 : i32
    %60 = arith.muli %c2_i32, %c8_i32_45 : i32
    %61 = tpu.assume_multiple %60, 8 : i32
    %62 = arith.index_cast %61 : i32 to index
    %c0_46 = arith.constant 0 : index
    %63 = vector.load %arg1[%62, %c0_46] : memref<24x16xf32, #tpu.memory_space<vmem>>, vector<8x16xf32>
    %64 = arith.index_cast %61 : i32 to index
    %c0_47 = arith.constant 0 : index
    %65 = vector.load %arg2[%64, %c0_47] : memref<24x16xf32, #tpu.memory_space<vmem>>, vector<8x16xf32>
    %c0_48 = arith.constant 0 : index
    %c0_49 = arith.constant 0 : index
    %66 = vector.load %arg3[%c0_48, %c0_49] : memref<16x64xf32, #tpu.memory_space<vmem>>, vector<16x64xf32>
    %cst_50 = arith.constant dense<0.000000e+00> : vector<8x64xf32>
    %67 = tpu.matmul %63, %66, %cst_50 {dimension_numbers = #tpu.dot_dimension_numbers<[1], [0], [0], [1], [0, 0, 1, 1], [], []>} : vector<8x16xf32>, vector<16x64xf32>, vector<8x64xf32> -> vector<8x64xf32>
    %c0_51 = arith.constant 0 : index
    %c0_52 = arith.constant 0 : index
    %68 = vector.load %arg4[%c0_51, %c0_52] : memref<16x64xf32, #tpu.memory_space<vmem>>, vector<16x64xf32>
    %cst_53 = arith.constant dense<0.000000e+00> : vector<8x64xf32>
    %69 = tpu.matmul %65, %68, %cst_53 {dimension_numbers = #tpu.dot_dimension_numbers<[1], [0], [0], [1], [0, 0, 1, 1], [], []>} : vector<8x16xf32>, vector<16x64xf32>, vector<8x64xf32> -> vector<8x64xf32>
    %70 = arith.addf %67, %69 : vector<8x64xf32>
    %c0_54 = arith.constant 0 : index
    %c0_55 = arith.constant 0 : index
    %71 = vector.load %arg5[%c0_54, %c0_55] : memref<1x64xf32, #tpu.memory_space<vmem>>, vector<1x64xf32>
    %72 = vector.broadcast %71 : vector<1x64xf32> to vector<8x64xf32>
    %73 = arith.addf %70, %72 : vector<8x64xf32>
    %cst_56 = arith.constant 0.000000e+00 : f32
    %74 = vector.broadcast %cst_56 : f32 to vector<8x64xf32>
    %75 = arith.maximumf %73, %74 : vector<8x64xf32>
    %c0_57 = arith.constant 0 : index
    %c0_58 = arith.constant 0 : index
    %76 = vector.load %arg6[%c0_57, %c0_58] : memref<64x32xf32, #tpu.memory_space<vmem>>, vector<64x32xf32>
    %cst_59 = arith.constant dense<0.000000e+00> : vector<8x32xf32>
    %77 = tpu.matmul %75, %76, %cst_59 {dimension_numbers = #tpu.dot_dimension_numbers<[1], [0], [0], [1], [0, 0, 1, 1], [], []>} : vector<8x64xf32>, vector<64x32xf32>, vector<8x32xf32> -> vector<8x32xf32>
    %c0_60 = arith.constant 0 : index
    %c0_61 = arith.constant 0 : index
    %78 = vector.load %arg7[%c0_60, %c0_61] : memref<1x32xf32, #tpu.memory_space<vmem>>, vector<1x32xf32>
    %79 = vector.broadcast %78 : vector<1x32xf32> to vector<8x32xf32>
    %80 = arith.addf %77, %79 : vector<8x32xf32>
    %cst_62 = arith.constant 0.000000e+00 : f32
    %81 = vector.broadcast %cst_62 : f32 to vector<8x32xf32>
    %82 = arith.maximumf %80, %81 : vector<8x32xf32>
    %c0_63 = arith.constant 0 : index
    %c0_64 = arith.constant 0 : index
    %83 = vector.load %arg8[%c0_63, %c0_64] : memref<32x8xf32, #tpu.memory_space<vmem>>, vector<32x8xf32>
    %cst_65 = arith.constant dense<0.000000e+00> : vector<8x8xf32>
    %84 = tpu.matmul %82, %83, %cst_65 {dimension_numbers = #tpu.dot_dimension_numbers<[1], [0], [0], [1], [0, 0, 1, 1], [], []>} : vector<8x32xf32>, vector<32x8xf32>, vector<8x8xf32> -> vector<8x8xf32>
    %c0_66 = arith.constant 0 : index
    %c0_67 = arith.constant 0 : index
    %85 = vector.load %arg9[%c0_66, %c0_67] : memref<1x8xf32, #tpu.memory_space<vmem>>, vector<1x8xf32>
    %86 = vector.broadcast %85 : vector<1x8xf32> to vector<8x8xf32>
    %87 = arith.addf %84, %86 : vector<8x8xf32>
    %88 = arith.index_cast %61 : i32 to index
    %c0_68 = arith.constant 0 : index
    %89 = vector.load %arg10[%88, %c0_68] : memref<24x8xf32, #tpu.memory_space<vmem>>, vector<8x8xf32>
    tpu.vector_store %arg10[%88, %c0_68], %87 {strides = array<i32>} : memref<24x8xf32, #tpu.memory_space<vmem>>, vector<8x8xf32>,
    %c3_i32 = arith.constant 3 : i32
    return
  }
  func.func @transform_0(%arg0: i32) -> (i32, i32) {
    %c0_i32 = arith.constant 0 : i32
    %c0_i32_0 = arith.constant 0 : i32
    return %arg0, %c0_i32 : i32, i32
  }
  func.func @transform_1(%arg0: i32) -> (i32, i32) {
    %c0_i32 = arith.constant 0 : i32
    %c0_i32_0 = arith.constant 0 : i32
    return %arg0, %c0_i32 : i32, i32
  }
  func.func @transform_2(%arg0: i32) -> (i32, i32) {
    %c0_i32 = arith.constant 0 : i32
    %c0_i32_0 = arith.constant 0 : i32
    %c0_i32_1 = arith.constant 0 : i32
    return %c0_i32, %c0_i32_0 : i32, i32
  }
  func.func @transform_3(%arg0: i32) -> (i32, i32) {
    %c0_i32 = arith.constant 0 : i32
    %c0_i32_0 = arith.constant 0 : i32
    %c0_i32_1 = arith.constant 0 : i32
    return %c0_i32, %c0_i32_0 : i32, i32
  }
  func.func @transform_4(%arg0: i32) -> (i32, i32) {
    %c0_i32 = arith.constant 0 : i32
    %c0_i32_0 = arith.constant 0 : i32
    %c0_i32_1 = arith.constant 0 : i32
    return %c0_i32, %c0_i32_0 : i32, i32
  }
  func.func @transform_5(%arg0: i32) -> (i32, i32) {
    %c0_i32 = arith.constant 0 : i32
    %c0_i32_0 = arith.constant 0 : i32
    %c0_i32_1 = arith.constant 0 : i32
    return %c0_i32, %c0_i32_0 : i32, i32
  }
  func.func @transform_6(%arg0: i32) -> (i32, i32) {
    %c0_i32 = arith.constant 0 : i32
    %c0_i32_0 = arith.constant 0 : i32
    %c0_i32_1 = arith.constant 0 : i32
    return %c0_i32, %c0_i32_0 : i32, i32
  }
  func.func @transform_7(%arg0: i32) -> (i32, i32) {
    %c0_i32 = arith.constant 0 : i32
    %c0_i32_0 = arith.constant 0 : i32
    %c0_i32_1 = arith.constant 0 : i32
    return %c0_i32, %c0_i32_0 : i32, i32
  }
  func.func @transform_8(%arg0: i32) -> (i32, i32) {
    %c0_i32 = arith.constant 0 : i32
    %c0_i32_0 = arith.constant 0 : i32
    %c0_i32_1 = arith.constant 0 : i32
    return %c0_i32, %c0_i32_0 : i32, i32
  }
  func.func @transform_9(%arg0: i32) -> (i32, i32) {
    %c0_i32 = arith.constant 0 : i32
    %c0_i32_0 = arith.constant 0 : i32
    return %arg0, %c0_i32 : i32, i32
  }
}

</mosaic_0001>

<llo_original>
// kernel: joint_relu_mlp.1
$region0: #{joint_relu_mlp.1}
  #allocation0 [shape = 'u32[]', space=smem, size = 0x4, offset = 0x4, fixed_abs, tag = 'smem constant byte address 0x4 - core index']
  #allocation1 [shape = 'u32[144,128]{1,0:T(1,128)}', space=vmem, size = 0x12000, scoped, tag = 'internal scratch']
  %s0 = inlined_call_operand.vmem [shape: f32[20,16], index: 0, kind: input, shape index: {}]
  %s1 = inlined_call_operand.vmem [shape: f32[20,16], index: 1, kind: input, shape index: {}]
  %s2 = inlined_call_operand.vmem [shape: f32[16,64], index: 2, kind: input, shape index: {}]
  %s3 = inlined_call_operand.vmem [shape: f32[16,64], index: 3, kind: input, shape index: {}]
  %s4 = inlined_call_operand.vmem [shape: f32[1,64], index: 4, kind: input, shape index: {}]
  %s5 = inlined_call_operand.vmem [shape: f32[64,32], index: 5, kind: input, shape index: {}]
  %s6 = inlined_call_operand.vmem [shape: f32[1,32], index: 6, kind: input, shape index: {}]
  %s7 = inlined_call_operand.vmem [shape: f32[32,8], index: 7, kind: input, shape index: {}]
  %s8 = inlined_call_operand.vmem [shape: f32[1,8], index: 8, kind: input, shape index: {}]
  %s9 = inlined_call_operand.vmem [shape: f32[20,8], index: 9, kind: output, shape index: {}]
  %s10 = sld [smem:[#allocation0]]
  $region46: #{joint_relu_mlp.1} parent=0
    _
  %s12 = ssub.s32 1, %s10
  %s13 = scalar_select 0, %s12, %s10
  // Predicated region
  $region2: #{joint_relu_mlp.1} parent=0 // pred_check
    _
  $region3: #{joint_relu_mlp.1} parent=0 // pred_check_branch
    %15 = sbr.rel (0) target = $region5
  $region4: #{joint_relu_mlp.1} parent=0 // pred_region
    _
  $region5: #{joint_relu_mlp.1} parent=0 // pred_fallthru
    _
  // Predicated region
  $region6: #{joint_relu_mlp.1} parent=0 // pred_check
    _
  $region7: #{joint_relu_mlp.1} parent=0 // pred_check_branch
    %17 = sbr.rel (0) target = $region9
  $region8: #{joint_relu_mlp.1} parent=0 // pred_region
    _
  $region9: #{joint_relu_mlp.1} parent=0 // pred_fallthru
    _
  // Predicated region
  $region10: #{joint_relu_mlp.1} parent=0 // pred_check
    _
  $region11: #{joint_relu_mlp.1} parent=0 // pred_check_branch
    %19 = sbr.rel (0) target = $region13
  $region12: #{joint_relu_mlp.1} parent=0 // pred_region
    _
  $region13: #{joint_relu_mlp.1} parent=0 // pred_fallthru
    _
  // Predicated region
  $region14: #{joint_relu_mlp.1} parent=0 // pred_check
    _
  $region15: #{joint_relu_mlp.1} parent=0 // pred_check_branch
    %21 = sbr.rel (0) target = $region17
  $region16: #{joint_relu_mlp.1} parent=0 // pred_region
    _
  $region17: #{joint_relu_mlp.1} parent=0 // pred_fallthru
    _
  // Predicated region
  $region18: #{joint_relu_mlp.1} parent=0 // pred_check
    _
  $region19: #{joint_relu_mlp.1} parent=0 // pred_check_branch
    %23 = sbr.rel (0) target = $region21
  $region20: #{joint_relu_mlp.1} parent=0 // pred_region
    _
  $region21: #{joint_relu_mlp.1} parent=0 // pred_fallthru
    _
  // Predicated region
  $region22: #{joint_relu_mlp.1} parent=0 // pred_check
    _
  $region23: #{joint_relu_mlp.1} parent=0 // pred_check_branch
    %25 = sbr.rel (0) target = $region25
  $region24: #{joint_relu_mlp.1} parent=0 // pred_region
    _
  $region25: #{joint_relu_mlp.1} parent=0 // pred_fallthru
    _
  // Predicated region
  $region26: #{joint_relu_mlp.1} parent=0 // pred_check
    _
  $region27: #{joint_relu_mlp.1} parent=0 // pred_check_branch
    %27 = sbr.rel (0) target = $region29
  $region28: #{joint_relu_mlp.1} parent=0 // pred_region
    _
  $region29: #{joint_relu_mlp.1} parent=0 // pred_fallthru
    _
  // Predicated region
  $region30: #{joint_relu_mlp.1} parent=0 // pred_check
    _
  $region31: #{joint_relu_mlp.1} parent=0 // pred_check_branch
    %29 = sbr.rel (0) target = $region33
  $region32: #{joint_relu_mlp.1} parent=0 // pred_region
    _
  $region33: #{joint_relu_mlp.1} parent=0 // pred_fallthru
    _
  // Predicated region
  $region34: #{joint_relu_mlp.1} parent=0 // pred_check
    _
  $region35: #{joint_relu_mlp.1} parent=0 // pred_check_branch
    %31 = sbr.rel (0) target = $region37
  $region36: #{joint_relu_mlp.1} parent=0 // pred_region
    _
  $region37: #{joint_relu_mlp.1} parent=0 // pred_fallthru
    _
  %v32 = vld [vmem:[%s0] sm:$0xff]
  %v33 = vld [vmem:[%s1] sm:$0xff]
  %v34 = vld [vmem:[%s2] sm:$0xff]
  %v35 = vld [vmem:[%s2 + $0x8] sm:$0xff]
  %v36 = vld [vmem:[%s3] sm:$0xff]
  %v37 = vld [vmem:[%s3 + $0x8] sm:$0xff]
  %vm38 = vcmask 130048
  %v40 = vsel %vm38, %v33, 0
  %42 = vmatprep.subr.mxu0 0.0
  %43 = vmatpush1.msra.mxu0 %v36
  %44 = vmatprep.subr.mxu0 0.0
  %45 = vmatpush1.msra.mxu0 %v37
  %46 = vmatprep.subr.mxu0 0.0
  %47 = vmatpush1.msra.mxu0 0.0
  %48 = vmatprep.subr.mxu0 0.0
  %49 = vmatpush1.msra.mxu0 0.0
  %50 = vmatprep.subr.mxu0 0.0
  %51 = vmatpush1.msra.mxu0 0.0
  %52 = vmatprep.subr.mxu0 0.0
  %53 = vmatpush1.msra.mxu0 0.0
  %54 = vmatprep.subr.mxu0 0.0
  %55 = vmatpush1.msra.mxu0 0.0
  %56 = vmatprep.subr.mxu0 0.0
  %57 = vmatpush1.msra.mxu0 0.0
  %58 = vmatprep.subr.mxu0 0.0
  %59 = vmatpush1.msra.mxu0 0.0
  %60 = vmatprep.subr.mxu0 0.0
  %61 = vmatpush1.msra.mxu0 0.0
  %62 = vmatprep.subr.mxu0 0.0
  %63 = vmatpush1.msra.mxu0 0.0
  %64 = vmatprep.subr.mxu0 0.0
  %65 = vmatpush1.msra.mxu0 0.0
  %66 = vmatprep.subr.mxu0 0.0
  %67 = vmatpush1.msra.mxu0 0.0
  %68 = vmatprep.subr.mxu0 0.0
  %69 = vmatpush1.msra.mxu0 0.0
  %70 = vmatprep.subr.mxu0 0.0
  %71 = vmatpush1.msra.mxu0 0.0
  %72 = vmatprep.subr.mxu0 0.0
  %73 = vmatpush1.msra.mxu0 0.0
  %74 = vmatprep.subr.mxu0 0.0
  %75 = vmatpush1.msra.mxu0 0.0
  %76 = vmatprep.subr.mxu0 0.0
  %77 = vmatpush1.msra.mxu0 0.0
  %78 = vmatprep.subr.mxu0 0.0
  %79 = vmatpush1.msra.mxu0 0.0
  %80 = vmatprep.subr.mxu0 0.0
  %81 = vmatpush1.msra.mxu0 0.0
  %82 = vmatprep.subr.mxu0 0.0
  %83 = vmatpush1.msra.mxu0 0.0
  %84 = vmatprep.subr.mxu0 0.0
  %85 = vmatpush1.msra.mxu0 0.0
  %86 = vmatprep.subr.mxu0 0.0
  %87 = vmatpush1.msra.mxu0 0.0
  %88 = vmatprep.subr.mxu0 0.0
  %89 = vmatpush1.msra.mxu0 0.0
  %90 = vmatprep.subr.mxu0 0.0
  %91 = vmatpush1.msra.mxu0 0.0
  %92 = vmatprep.subr.mxu0 0.0
  %93 = vmatpush1.msra.mxu0 0.0
  %94 = vmatprep.subr.mxu0 0.0
  %95 = vmatpush1.msra.mxu0 0.0
  %96 = vmatprep.subr.mxu0 0.0
  %97 = vmatpush1.msra.mxu0 0.0
  %98 = vmatprep.subr.mxu0 0.0
  %99 = vmatpush1.msra.mxu0 0.0
  %100 = vmatprep.subr.mxu0 0.0
  %101 = vmatpush1.msra.mxu0 0.0
  %102 = vmatprep.subr.mxu0 0.0
  %103 = vmatpush1.msra.mxu0 0.0
  %104 = vmatprep.subr.mxu0 0.0
  %105 = vmatpush1.msra.mxu0 0.0
  %106 = vmatprep.mubr.f32.mxu0 0.0
  %107 = vmatmul.mubr.f32.gmra.mrb[0].mxu0 %v40
  %v108 = vpop.f32.mrb[0].mxu0
  %v109 = vadd.f32 0.0, %v108
  %v110 = vpop.f32.mrb[0].mxu0
  %111 = vdwg.mxu0
  %v113 = vsel %vm38, %v32, 0
  %115 = vmatprep.subr.mxu0 0.0
  %116 = vmatpush1.msra.mxu0 %v34
  %117 = vmatprep.subr.mxu0 0.0
  %118 = vmatpush1.msra.mxu0 %v35
  %119 = vmatprep.subr.mxu0 0.0
  %120 = vmatpush1.msra.mxu0 0.0
  %121 = vmatprep.subr.mxu0 0.0
  %122 = vmatpush1.msra.mxu0 0.0
  %123 = vmatprep.subr.mxu0 0.0
  %124 = vmatpush1.msra.mxu0 0.0
  %125 = vmatprep.subr.mxu0 0.0
  %126 = vmatpush1.msra.mxu0 0.0
  %127 = vmatprep.subr.mxu0 0.0
  %128 = vmatpush1.msra.mxu0 0.0
  %129 = vmatprep.subr.mxu0 0.0
  %130 = vmatpush1.msra.mxu0 0.0
  %131 = vmatprep.subr.mxu0 0.0
  %132 = vmatpush1.msra.mxu0 0.0
  %133 = vmatprep.subr.mxu0 0.0
  %134 = vmatpush1.msra.mxu0 0.0
  %135 = vmatprep.subr.mxu0 0.0
  %136 = vmatpush1.msra.mxu0 0.0
  %137 = vmatprep.subr.mxu0 0.0
  %138 = vmatpush1.msra.mxu0 0.0
  %139 = vmatprep.subr.mxu0 0.0
  %140 = vmatpush1.msra.mxu0 0.0
  %141 = vmatprep.subr.mxu0 0.0
  %142 = vmatpush1.msra.mxu0 0.0
  %143 = vmatprep.subr.mxu0 0.0
  %144 = vmatpush1.msra.mxu0 0.0
  %145 = vmatprep.subr.mxu0 0.0
  %146 = vmatpush1.msra.mxu0 0.0
  %147 = vmatprep.subr.mxu0 0.0
  %148 = vmatpush1.msra.mxu0 0.0
  %149 = vmatprep.subr.mxu0 0.0
  %150 = vmatpush1.msra.mxu0 0.0
  %151 = vmatprep.subr.mxu0 0.0
  %152 = vmatpush1.msra.mxu0 0.0
  %153 = vmatprep.subr.mxu0 0.0
  %154 = vmatpush1.msra.mxu0 0.0
  %155 = vmatprep.subr.mxu0 0.0
  %156 = vmatpush1.msra.mxu0 0.0
  %157 = vmatprep.subr.mxu0 0.0
  %158 = vmatpush1.msra.mxu0 0.0
  %159 = vmatprep.subr.mxu0 0.0
  %160 = vmatpush1.msra.mxu0 0.0
  %161 = vmatprep.subr.mxu0 0.0
  %162 = vmatpush1.msra.mxu0 0.0
  %163 = vmatprep.subr.mxu0 0.0
  %164 = vmatpush1.msra.mxu0 0.0
  %165 = vmatprep.subr.mxu0 0.0
  %166 = vmatpush1.msra.mxu0 0.0
  %167 = vmatprep.subr.mxu0 0.0
  %168 = vmatpush1.msra.mxu0 0.0
  %169 = vmatprep.subr.mxu0 0.0
  %170 = vmatpush1.msra.mxu0 0.0
  %171 = vmatprep.subr.mxu0 0.0
  %172 = vmatpush1.msra.mxu0 0.0
  %173 = vmatprep.subr.mxu0 0.0
  %174 = vmatpush1.msra.mxu0 0.0
  %175 = vmatprep.subr.mxu0 0.0
  %176 = vmatpush1.msra.mxu0 0.0
  %177 = vmatprep.subr.mxu0 0.0
  %178 = vmatpush1.msra.mxu0 0.0
  %179 = vmatprep.mubr.f32.mxu0 0.0
  %180 = vmatmul.mubr.f32.gmra.mrb[0].mxu0 %v113
  %v181 = vpop.f32.mrb[0].mxu0
  %v182 = vadd.f32 %v109, %v181
  %v183 = vpop.f32.mrb[0].mxu0
  %184 = vdwg.mxu0
  %v185 = vld [vmem:[%s4] sm:$0x1]
  %v187 = vlaneseq
  %v188 = vshrl.u32 %v187, 7
  %v189 = vsub.s32 0, %v188
  %v190 = vrot.slane %v185, %v189
  %v192 = vadd.f32 %v182, %v190
  %v193 = vmax.f32 %v192, 0.0
  %v194 = vld [vmem:[%s5] sm:$0xff]
  %v195 = vld [vmem:[%s5 + $0x8] sm:$0xff]
  %v196 = vld [vmem:[%s5 + $0x10] sm:$0xff]
  %v197 = vld [vmem:[%s5 + $0x18] sm:$0xff]
  %v198 = vld [vmem:[%s5 + $0x20] sm:$0xff]
  %v199 = vld [vmem:[%s5 + $0x28] sm:$0xff]
  %v200 = vld [vmem:[%s5 + $0x30] sm:$0xff]
  %v201 = vld [vmem:[%s5 + $0x38] sm:$0xff]
  %v202 = vld [vmem:[%s6] sm:$0x1]
  %v204 = vlaneseq
  %v205 = vshrl.u32 %v204, 7
  %v206 = vsub.s32 0, %v205
  %v207 = vrot.slane %v202, %v206
  %vm209 = vcmask 523264
  %v211 = vsel %vm209, %v193, 0
  %213 = vmatprep.subr.mxu0 0.0
  %214 = vmatpush1.msra.mxu0 %v194
  %215 = vmatprep.subr.mxu0 0.0
  %216 = vmatpush1.msra.mxu0 %v195
  %217 = vmatprep.subr.mxu0 0.0
  %218 = vmatpush1.msra.mxu0 %v196
  %219 = vmatprep.subr.mxu0 0.0
  %220 = vmatpush1.msra.mxu0 %v197
  %221 = vmatprep.subr.mxu0 0.0
  %222 = vmatpush1.msra.mxu0 %v198
  %223 = vmatprep.subr.mxu0 0.0
  %224 = vmatpush1.msra.mxu0 %v199
  %225 = vmatprep.subr.mxu0 0.0
  %226 = vmatpush1.msra.mxu0 %v200
  %227 = vmatprep.subr.mxu0 0.0
  %228 = vmatpush1.msra.mxu0 %v201
  %229 = vmatprep.subr.mxu0 0.0
  %230 = vmatpush1.msra.mxu0 0.0
  %231 = vmatprep.subr.mxu0 0.0
  %232 = vmatpush1.msra.mxu0 0.0
  %233 = vmatprep.subr.mxu0 0.0
  %234 = vmatpush1.msra.mxu0 0.0
  %235 = vmatprep.subr.mxu0 0.0
  %236 = vmatpush1.msra.mxu0 0.0
  %237 = vmatprep.subr.mxu0 0.0
  %238 = vmatpush1.msra.mxu0 0.0
  %239 = vmatprep.subr.mxu0 0.0
  %240 = vmatpush1.msra.mxu0 0.0
  %241 = vmatprep.subr.mxu0 0.0
  %242 = vmatpush1.msra.mxu0 0.0
  %243 = vmatprep.subr.mxu0 0.0
  %244 = vmatpush1.msra.mxu0 0.0
  %245 = vmatprep.subr.mxu0 0.0
  %246 = vmatpush1.msra.mxu0 0.0
  %247 = vmatprep.subr.mxu0 0.0
  %248 = vmatpush1.msra.mxu0 0.0
  %249 = vmatprep.subr.mxu0 0.0
  %250 = vmatpush1.msra.mxu0 0.0
  %251 = vmatprep.subr.mxu0 0.0
  %252 = vmatpush1.msra.mxu0 0.0
  %253 = vmatprep.subr.mxu0 0.0
  %254 = vmatpush1.msra.mxu0 0.0
  %255 = vmatprep.subr.mxu0 0.0
  %256 = vmatpush1.msra.mxu0 0.0
  %257 = vmatprep.subr.mxu0 0.0
  %258 = vmatpush1.msra.mxu0 0.0
  %259 = vmatprep.subr.mxu0 0.0
  %260 = vmatpush1.msra.mxu0 0.0
  %261 = vmatprep.subr.mxu0 0.0
  %262 = vmatpush1.msra.mxu0 0.0
  %263 = vmatprep.subr.mxu0 0.0
  %264 = vmatpush1.msra.mxu0 0.0
  %265 = vmatprep.subr.mxu0 0.0
  %266 = vmatpush1.msra.mxu0 0.0
  %267 = vmatprep.subr.mxu0 0.0
  %268 = vmatpush1.msra.mxu0 0.0
  %269 = vmatprep.subr.mxu0 0.0
  %270 = vmatpush1.msra.mxu0 0.0
  %271 = vmatprep.subr.mxu0 0.0
  %272 = vmatpush1.msra.mxu0 0.0
  %273 = vmatprep.subr.mxu0 0.0
  %274 = vmatpush1.msra.mxu0 0.0
  %275 = vmatprep.subr.mxu0 0.0
  %276 = vmatpush1.msra.mxu0 0.0
  %277 = vmatprep.mubr.f32.mxu0 0.0
  %278 = vmatmul.mubr.f32.gmra.mrb[0].mxu0 %v211
  %v279 = vpop.f32.mrb[0].mxu0
  %v280 = vadd.f32 %v207, %v279
  %v281 = vpop.f32.mrb[0].mxu0
  %282 = vdwg.mxu0
  %v283 = vmax.f32 %v280, 0.0
  %v284 = vld [vmem:[%s7] sm:$0xff]
  %v285 = vld [vmem:[%s7 + $0x8] sm:$0xff]
  %v286 = vld [vmem:[%s7 + $0x10] sm:$0xff]
  %v287 = vld [vmem:[%s7 + $0x18] sm:$0xff]
  %v288 = vld [vmem:[%s8] sm:$0x1]
  %v290 = vlaneseq
  %v291 = vshrl.u32 %v290, 7
  %v292 = vsub.s32 0, %v291
  %v293 = vrot.slane %v288, %v292
  %vm295 = vcmask 261120
  %v297 = vsel %vm295, %v283, 0
  %299 = vmatprep.subr.mxu0 0.0
  %300 = vmatpush1.msra.mxu0 %v284
  %301 = vmatprep.subr.mxu0 0.0
  %302 = vmatpush1.msra.mxu0 %v285
  %303 = vmatprep.subr.mxu0 0.0
  %304 = vmatpush1.msra.mxu0 %v286
  %305 = vmatprep.subr.mxu0 0.0
  %306 = vmatpush1.msra.mxu0 %v287
  %307 = vmatprep.subr.mxu0 0.0
  %308 = vmatpush1.msra.mxu0 0.0
  %309 = vmatprep.subr.mxu0 0.0
  %310 = vmatpush1.msra.mxu0 0.0
  %311 = vmatprep.subr.mxu0 0.0
  %312 = vmatpush1.msra.mxu0 0.0
  %313 = vmatprep.subr.mxu0 0.0
  %314 = vmatpush1.msra.mxu0 0.0
  %315 = vmatprep.subr.mxu0 0.0
  %316 = vmatpush1.msra.mxu0 0.0
  %317 = vmatprep.subr.mxu0 0.0
  %318 = vmatpush1.msra.mxu0 0.0
  %319 = vmatprep.subr.mxu0 0.0
  %320 = vmatpush1.msra.mxu0 0.0
  %321 = vmatprep.subr.mxu0 0.0
  %322 = vmatpush1.msra.mxu0 0.0
  %323 = vmatprep.subr.mxu0 0.0
  %324 = vmatpush1.msra.mxu0 0.0
  %325 = vmatprep.subr.mxu0 0.0
  %326 = vmatpush1.msra.mxu0 0.0
  %327 = vmatprep.subr.mxu0 0.0
  %328 = vmatpush1.msra.mxu0 0.0
  %329 = vmatprep.subr.mxu0 0.0
  %330 = vmatpush1.msra.mxu0 0.0
  %331 = vmatprep.subr.mxu0 0.0
  %332 = vmatpush1.msra.mxu0 0.0
  %333 = vmatprep.subr.mxu0 0.0
  %334 = vmatpush1.msra.mxu0 0.0
  %335 = vmatprep.subr.mxu0 0.0
  %336 = vmatpush1.msra.mxu0 0.0
  %337 = vmatprep.subr.mxu0 0.0
  %338 = vmatpush1.msra.mxu0 0.0
  %339 = vmatprep.subr.mxu0 0.0
  %340 = vmatpush1.msra.mxu0 0.0
  %341 = vmatprep.subr.mxu0 0.0
  %342 = vmatpush1.msra.mxu0 0.0
  %343 = vmatprep.subr.mxu0 0.0
  %344 = vmatpush1.msra.mxu0 0.0
  %345 = vmatprep.subr.mxu0 0.0
  %346 = vmatpush1.msra.mxu0 0.0
  %347 = vmatprep.subr.mxu0 0.0
  %348 = vmatpush1.msra.mxu0 0.0
  %349 = vmatprep.subr.mxu0 0.0
  %350 = vmatpush1.msra.mxu0 0.0
  %351 = vmatprep.subr.mxu0 0.0
  %352 = vmatpush1.msra.mxu0 0.0
  %353 = vmatprep.subr.mxu0 0.0
  %354 = vmatpush1.msra.mxu0 0.0
  %355 = vmatprep.subr.mxu0 0.0
  %356 = vmatpush1.msra.mxu0 0.0
  %357 = vmatprep.subr.mxu0 0.0
  %358 = vmatpush1.msra.mxu0 0.0
  %359 = vmatprep.subr.mxu0 0.0
  %360 = vmatpush1.msra.mxu0 0.0
  %361 = vmatprep.subr.mxu0 0.0
  %362 = vmatpush1.msra.mxu0 0.0
  %363 = vmatprep.mubr.f32.mxu0 0.0
  %364 = vmatmul.mubr.f32.gmra.mrb[0].mxu0 %v297
  %v365 = vpop.f32.mrb[0].mxu0
  %v366 = vadd.f32 %v293, %v365
  %v367 = vpop.f32.mrb[0].mxu0
  %368 = vdwg.mxu0
  %vm369 = vcmask 64512
  %370 = vst.msk [vmem:[%s9] sm:$0xff] %vm369, %v366
  %s371 = scalar_lea.vmem %s0, 8
  %v372 = vld [vmem:[%s371] sm:$0xff]
  %s373 = scalar_lea.vmem %s1, 8
  %v374 = vld [vmem:[%s373] sm:$0xff]
  %v375 = vld [vmem:[%s2] sm:$0xff]
  %v376 = vld [vmem:[%s2 + $0x8] sm:$0xff]
  %v377 = vld [vmem:[%s3] sm:$0xff]
  %v378 = vld [vmem:[%s3 + $0x8] sm:$0xff]
  %v380 = vsel %vm38, %v374, 0
  %382 = vmatprep.subr.mxu0 0.0
  %383 = vmatpush1.msra.mxu0 %v377
  %384 = vmatprep.subr.mxu0 0.0
  %385 = vmatpush1.msra.mxu0 %v378
  %386 = vmatprep.subr.mxu0 0.0
  %387 = vmatpush1.msra.mxu0 0.0
  %388 = vmatprep.subr.mxu0 0.0
  %389 = vmatpush1.msra.mxu0 0.0
  %390 = vmatprep.subr.mxu0 0.0
  %391 = vmatpush1.msra.mxu0 0.0
  %392 = vmatprep.subr.mxu0 0.0
  %393 = vmatpush1.msra.mxu0 0.0
  %394 = vmatprep.subr.mxu0 0.0
  %395 = vmatpush1.msra.mxu0 0.0
  %396 = vmatprep.subr.mxu0 0.0
  %397 = vmatpush1.msra.mxu0 0.0
  %398 = vmatprep.subr.mxu0 0.0
  %399 = vmatpush1.msra.mxu0 0.0
  %400 = vmatprep.subr.mxu0 0.0
  %401 = vmatpush1.msra.mxu0 0.0
  %402 = vmatprep.subr.mxu0 0.0
  %403 = vmatpush1.msra.mxu0 0.0
  %404 = vmatprep.subr.mxu0 0.0
  %405 = vmatpush1.msra.mxu0 0.0
  %406 = vmatprep.subr.mxu0 0.0
  %407 = vmatpush1.msra.mxu0 0.0
  %408 = vmatprep.subr.mxu0 0.0
  %409 = vmatpush1.msra.mxu0 0.0
  %410 = vmatprep.subr.mxu0 0.0
  %411 = vmatpush1.msra.mxu0 0.0
  %412 = vmatprep.subr.mxu0 0.0
  %413 = vmatpush1.msra.mxu0 0.0
  %414 = vmatprep.subr.mxu0 0.0
  %415 = vmatpush1.msra.mxu0 0.0
  %416 = vmatprep.subr.mxu0 0.0
  %417 = vmatpush1.msra.mxu0 0.0
  %418 = vmatprep.subr.mxu0 0.0
  %419 = vmatpush1.msra.mxu0 0.0
  %420 = vmatprep.subr.mxu0 0.0
  %421 = vmatpush1.msra.mxu0 0.0
  %422 = vmatprep.subr.mxu0 0.0
  %423 = vmatpush1.msra.mxu0 0.0
  %424 = vmatprep.subr.mxu0 0.0
  %425 = vmatpush1.msra.mxu0 0.0
  %426 = vmatprep.subr.mxu0 0.0
  %427 = vmatpush1.msra.mxu0 0.0
  %428 = vmatprep.subr.mxu0 0.0
  %429 = vmatpush1.msra.mxu0 0.0
  %430 = vmatprep.subr.mxu0 0.0
  %431 = vmatpush1.msra.mxu0 0.0
  %432 = vmatprep.subr.mxu0 0.0
  %433 = vmatpush1.msra.mxu0 0.0
  %434 = vmatprep.subr.mxu0 0.0
  %435 = vmatpush1.msra.mxu0 0.0
  %436 = vmatprep.subr.mxu0 0.0
  %437 = vmatpush1.msra.mxu0 0.0
  %438 = vmatprep.subr.mxu0 0.0
  %439 = vmatpush1.msra.mxu0 0.0
  %440 = vmatprep.subr.mxu0 0.0
  %441 = vmatpush1.msra.mxu0 0.0
  %442 = vmatprep.subr.mxu0 0.0
  %443 = vmatpush1.msra.mxu0 0.0
  %444 = vmatprep.subr.mxu0 0.0
  %445 = vmatpush1.msra.mxu0 0.0
  %446 = vmatprep.mubr.f32.mxu0 0.0
  %447 = vmatmul.mubr.f32.gmra.mrb[0].mxu0 %v380
  %v448 = vpop.f32.mrb[0].mxu0
  %v449 = vadd.f32 0.0, %v448
  %v450 = vpop.f32.mrb[0].mxu0
  %451 = vdwg.mxu0
  %v453 = vsel %vm38, %v372, 0
  %455 = vmatprep.subr.mxu0 0.0
  %456 = vmatpush1.msra.mxu0 %v375
  %457 = vmatprep.subr.mxu0 0.0
  %458 = vmatpush1.msra.mxu0 %v376
  %459 = vmatprep.subr.mxu0 0.0
  %460 = vmatpush1.msra.mxu0 0.0
  %461 = vmatprep.subr.mxu0 0.0
  %462 = vmatpush1.msra.mxu0 0.0
  %463 = vmatprep.subr.mxu0 0.0
  %464 = vmatpush1.msra.mxu0 0.0
  %465 = vmatprep.subr.mxu0 0.0
  %466 = vmatpush1.msra.mxu0 0.0
  %467 = vmatprep.subr.mxu0 0.0
  %468 = vmatpush1.msra.mxu0 0.0
  %469 = vmatprep.subr.mxu0 0.0
  %470 = vmatpush1.msra.mxu0 0.0
  %471 = vmatprep.subr.mxu0 0.0
  %472 = vmatpush1.msra.mxu0 0.0
  %473 = vmatprep.subr.mxu0 0.0
  %474 = vmatpush1.msra.mxu0 0.0
  %475 = vmatprep.subr.mxu0 0.0
  %476 = vmatpush1.msra.mxu0 0.0
  %477 = vmatprep.subr.mxu0 0.0
  %478 = vmatpush1.msra.mxu0 0.0
  %479 = vmatprep.subr.mxu0 0.0
  %480 = vmatpush1.msra.mxu0 0.0
  %481 = vmatprep.subr.mxu0 0.0
  %482 = vmatpush1.msra.mxu0 0.0
  %483 = vmatprep.subr.mxu0 0.0
  %484 = vmatpush1.msra.mxu0 0.0
  %485 = vmatprep.subr.mxu0 0.0
  %486 = vmatpush1.msra.mxu0 0.0
  %487 = vmatprep.subr.mxu0 0.0
  %488 = vmatpush1.msra.mxu0 0.0
  %489 = vmatprep.subr.mxu0 0.0
  %490 = vmatpush1.msra.mxu0 0.0
  %491 = vmatprep.subr.mxu0 0.0
  %492 = vmatpush1.msra.mxu0 0.0
  %493 = vmatprep.subr.mxu0 0.0
  %494 = vmatpush1.msra.mxu0 0.0
  %495 = vmatprep.subr.mxu0 0.0
  %496 = vmatpush1.msra.mxu0 0.0
  %497 = vmatprep.subr.mxu0 0.0
  %498 = vmatpush1.msra.mxu0 0.0
  %499 = vmatprep.subr.mxu0 0.0
  %500 = vmatpush1.msra.mxu0 0.0
  %501 = vmatprep.subr.mxu0 0.0
  %502 = vmatpush1.msra.mxu0 0.0
  %503 = vmatprep.subr.mxu0 0.0
  %504 = vmatpush1.msra.mxu0 0.0
  %505 = vmatprep.subr.mxu0 0.0
  %506 = vmatpush1.msra.mxu0 0.0
  %507 = vmatprep.subr.mxu0 0.0
  %508 = vmatpush1.msra.mxu0 0.0
  %509 = vmatprep.subr.mxu0 0.0
  %510 = vmatpush1.msra.mxu0 0.0
  %511 = vmatprep.subr.mxu0 0.0
  %512 = vmatpush1.msra.mxu0 0.0
  %513 = vmatprep.subr.mxu0 0.0
  %514 = vmatpush1.msra.mxu0 0.0
  %515 = vmatprep.subr.mxu0 0.0
  %516 = vmatpush1.msra.mxu0 0.0
  %517 = vmatprep.subr.mxu0 0.0
  %518 = vmatpush1.msra.mxu0 0.0
  %519 = vmatprep.mubr.f32.mxu0 0.0
  %520 = vmatmul.mubr.f32.gmra.mrb[0].mxu0 %v453
  %v521 = vpop.f32.mrb[0].mxu0
  %v522 = vadd.f32 %v449, %v521
  %v523 = vpop.f32.mrb[0].mxu0
  %524 = vdwg.mxu0
  %v525 = vld [vmem:[%s4] sm:$0x1]
  %v527 = vlaneseq
  %v528 = vshrl.u32 %v527, 7
  %v529 = vsub.s32 0, %v528
  %v530 = vrot.slane %v525, %v529
  %v532 = vadd.f32 %v522, %v530
  %v533 = vmax.f32 %v532, 0.0
  %v534 = vld [vmem:[%s5] sm:$0xff]
  %v535 = vld [vmem:[%s5 + $0x8] sm:$0xff]
  %v536 = vld [vmem:[%s5 + $0x10] sm:$0xff]
  %v537 = vld [vmem:[%s5 + $0x18] sm:$0xff]
  %v538 = vld [vmem:[%s5 + $0x20] sm:$0xff]
  %v539 = vld [vmem:[%s5 + $0x28] sm:$0xff]
  %v540 = vld [vmem:[%s5 + $0x30] sm:$0xff]
  %v541 = vld [vmem:[%s5 + $0x38] sm:$0xff]
  %v542 = vld [vmem:[%s6] sm:$0x1]
  %v544 = vlaneseq
  %v545 = vshrl.u32 %v544, 7
  %v546 = vsub.s32 0, %v545
  %v547 = vrot.slane %v542, %v546
  %v550 = vsel %vm209, %v533, 0
  %552 = vmatprep.subr.mxu0 0.0
  %553 = vmatpush1.msra.mxu0 %v534
  %554 = vmatprep.subr.mxu0 0.0
  %555 = vmatpush1.msra.mxu0 %v535
  %556 = vmatprep.subr.mxu0 0.0
  %557 = vmatpush1.msra.mxu0 %v536
  %558 = vmatprep.subr.mxu0 0.0
  %559 = vmatpush1.msra.mxu0 %v537
  %560 = vmatprep.subr.mxu0 0.0
  %561 = vmatpush1.msra.mxu0 %v538
  %562 = vmatprep.subr.mxu0 0.0
  %563 = vmatpush1.msra.mxu0 %v539
  %564 = vmatprep.subr.mxu0 0.0
  %565 = vmatpush1.msra.mxu0 %v540
  %566 = vmatprep.subr.mxu0 0.0
  %567 = vmatpush1.msra.mxu0 %v541
  %568 = vmatprep.subr.mxu0 0.0
  %569 = vmatpush1.msra.mxu0 0.0
  %570 = vmatprep.subr.mxu0 0.0
  %571 = vmatpush1.msra.mxu0 0.0
  %572 = vmatprep.subr.mxu0 0.0
  %573 = vmatpush1.msra.mxu0 0.0
  %574 = vmatprep.subr.mxu0 0.0
  %575 = vmatpush1.msra.mxu0 0.0
  %576 = vmatprep.subr.mxu0 0.0
  %577 = vmatpush1.msra.mxu0 0.0
  %578 = vmatprep.subr.mxu0 0.0
  %579 = vmatpush1.msra.mxu0 0.0
  %580 = vmatprep.subr.mxu0 0.0
  %581 = vmatpush1.msra.mxu0 0.0
  %582 = vmatprep.subr.mxu0 0.0
  %583 = vmatpush1.msra.mxu0 0.0
  %584 = vmatprep.subr.mxu0 0.0
  %585 = vmatpush1.msra.mxu0 0.0
  %586 = vmatprep.subr.mxu0 0.0
  %587 = vmatpush1.msra.mxu0 0.0
  %588 = vmatprep.subr.mxu0 0.0
  %589 = vmatpush1.msra.mxu0 0.0
  %590 = vmatprep.subr.mxu0 0.0
  %591 = vmatpush1.msra.mxu0 0.0
  %592 = vmatprep.subr.mxu0 0.0
  %593 = vmatpush1.msra.mxu0 0.0
  %594 = vmatprep.subr.mxu0 0.0
  %595 = vmatpush1.msra.mxu0 0.0
  %596 = vmatprep.subr.mxu0 0.0
  %597 = vmatpush1.msra.mxu0 0.0
  %598 = vmatprep.subr.mxu0 0.0
  %599 = vmatpush1.msra.mxu0 0.0
  %600 = vmatprep.subr.mxu0 0.0
  %601 = vmatpush1.msra.mxu0 0.0
  %602 = vmatprep.subr.mxu0 0.0
  %603 = vmatpush1.msra.mxu0 0.0
  %604 = vmatprep.subr.mxu0 0.0
  %605 = vmatpush1.msra.mxu0 0.0
  %606 = vmatprep.subr.mxu0 0.0
  %607 = vmatpush1.msra.mxu0 0.0
  %608 = vmatprep.subr.mxu0 0.0
  %609 = vmatpush1.msra.mxu0 0.0
  %610 = vmatprep.subr.mxu0 0.0
  %611 = vmatpush1.msra.mxu0 0.0
  %612 = vmatprep.subr.mxu0 0.0
  %613 = vmatpush1.msra.mxu0 0.0
  %614 = vmatprep.subr.mxu0 0.0
  %615 = vmatpush1.msra.mxu0 0.0
  %616 = vmatprep.mubr.f32.mxu0 0.0
  %617 = vmatmul.mubr.f32.gmra.mrb[0].mxu0 %v550
  %v618 = vpop.f32.mrb[0].mxu0
  %v619 = vadd.f32 %v547, %v618
  %v620 = vpop.f32.mrb[0].mxu0
  %621 = vdwg.mxu0
  %v622 = vmax.f32 %v619, 0.0
  %v623 = vld [vmem:[%s7] sm:$0xff]
  %v624 = vld [vmem:[%s7 + $0x8] sm:$0xff]
  %v625 = vld [vmem:[%s7 + $0x10] sm:$0xff]
  %v626 = vld [vmem:[%s7 + $0x18] sm:$0xff]
  %v627 = vld [vmem:[%s8] sm:$0x1]
  %v629 = vlaneseq
  %v630 = vshrl.u32 %v629, 7
  %v631 = vsub.s32 0, %v630
  %v632 = vrot.slane %v627, %v631
  %v635 = vsel %vm295, %v622, 0
  %637 = vmatprep.subr.mxu0 0.0
  %638 = vmatpush1.msra.mxu0 %v623
  %639 = vmatprep.subr.mxu0 0.0
  %640 = vmatpush1.msra.mxu0 %v624
  %641 = vmatprep.subr.mxu0 0.0
  %642 = vmatpush1.msra.mxu0 %v625
  %643 = vmatprep.subr.mxu0 0.0
  %644 = vmatpush1.msra.mxu0 %v626
  %645 = vmatprep.subr.mxu0 0.0
  %646 = vmatpush1.msra.mxu0 0.0
  %647 = vmatprep.subr.mxu0 0.0
  %648 = vmatpush1.msra.mxu0 0.0
  %649 = vmatprep.subr.mxu0 0.0
  %650 = vmatpush1.msra.mxu0 0.0
  %651 = vmatprep.subr.mxu0 0.0
  %652 = vmatpush1.msra.mxu0 0.0
  %653 = vmatprep.subr.mxu0 0.0
  %654 = vmatpush1.msra.mxu0 0.0
  %655 = vmatprep.subr.mxu0 0.0
  %656 = vmatpush1.msra.mxu0 0.0
  %657 = vmatprep.subr.mxu0 0.0
  %658 = vmatpush1.msra.mxu0 0.0
  %659 = vmatprep.subr.mxu0 0.0
  %660 = vmatpush1.msra.mxu0 0.0
  %661 = vmatprep.subr.mxu0 0.0
  %662 = vmatpush1.msra.mxu0 0.0
  %663 = vmatprep.subr.mxu0 0.0
  %664 = vmatpush1.msra.mxu0 0.0
  %665 = vmatprep.subr.mxu0 0.0
  %666 = vmatpush1.msra.mxu0 0.0
  %667 = vmatprep.subr.mxu0 0.0
  %668 = vmatpush1.msra.mxu0 0.0
  %669 = vmatprep.subr.mxu0 0.0
  %670 = vmatpush1.msra.mxu0 0.0
  %671 = vmatprep.subr.mxu0 0.0
  %672 = vmatpush1.msra.mxu0 0.0
  %673 = vmatprep.subr.mxu0 0.0
  %674 = vmatpush1.msra.mxu0 0.0
  %675 = vmatprep.subr.mxu0 0.0
  %676 = vmatpush1.msra.mxu0 0.0
  %677 = vmatprep.subr.mxu0 0.0
  %678 = vmatpush1.msra.mxu0 0.0
  %679 = vmatprep.subr.mxu0 0.0
  %680 = vmatpush1.msra.mxu0 0.0
  %681 = vmatprep.subr.mxu0 0.0
  %682 = vmatpush1.msra.mxu0 0.0
  %683 = vmatprep.subr.mxu0 0.0
  %684 = vmatpush1.msra.mxu0 0.0
  %685 = vmatprep.subr.mxu0 0.0
  %686 = vmatpush1.msra.mxu0 0.0
  %687 = vmatprep.subr.mxu0 0.0
  %688 = vmatpush1.msra.mxu0 0.0
  %689 = vmatprep.subr.mxu0 0.0
  %690 = vmatpush1.msra.mxu0 0.0
  %691 = vmatprep.subr.mxu0 0.0
  %692 = vmatpush1.msra.mxu0 0.0
  %693 = vmatprep.subr.mxu0 0.0
  %694 = vmatpush1.msra.mxu0 0.0
  %695 = vmatprep.subr.mxu0 0.0
  %696 = vmatpush1.msra.mxu0 0.0
  %697 = vmatprep.subr.mxu0 0.0
  %698 = vmatpush1.msra.mxu0 0.0
  %699 = vmatprep.subr.mxu0 0.0
  %700 = vmatpush1.msra.mxu0 0.0
  %701 = vmatprep.mubr.f32.mxu0 0.0
  %702 = vmatmul.mubr.f32.gmra.mrb[0].mxu0 %v635
  %v703 = vpop.f32.mrb[0].mxu0
  %v704 = vadd.f32 %v632, %v703
  %v705 = vpop.f32.mrb[0].mxu0
  %706 = vdwg.mxu0
  %s707 = scalar_lea.vmem %s9, 8
  %708 = vst.msk [vmem:[%s707] sm:$0xff] %vm369, %v704
  %s709 = scalar_lea.vmem %s0, 16
  %v710 = vld [vmem:[%s709] sm:$0xff]
  %s711 = scalar_lea.vmem %s1, 16
  %v712 = vld [vmem:[%s711] sm:$0xff]
  %v713 = vld [vmem:[%s2] sm:$0xff]
  %v714 = vld [vmem:[%s2 + $0x8] sm:$0xff]
  %v715 = vld [vmem:[%s3] sm:$0xff]
  %v716 = vld [vmem:[%s3 + $0x8] sm:$0xff]
  %v718 = vsel %vm38, %v712, 0
  %720 = vmatprep.subr.mxu0 0.0
  %721 = vmatpush1.msra.mxu0 %v715
  %722 = vmatprep.subr.mxu0 0.0
  %723 = vmatpush1.msra.mxu0 %v716
  %724 = vmatprep.subr.mxu0 0.0
  %725 = vmatpush1.msra.mxu0 0.0
  %726 = vmatprep.subr.mxu0 0.0
  %727 = vmatpush1.msra.mxu0 0.0
  %728 = vmatprep.subr.mxu0 0.0
  %729 = vmatpush1.msra.mxu0 0.0
  %730 = vmatprep.subr.mxu0 0.0
  %731 = vmatpush1.msra.mxu0 0.0
  %732 = vmatprep.subr.mxu0 0.0
  %733 = vmatpush1.msra.mxu0 0.0
  %734 = vmatprep.subr.mxu0 0.0
  %735 = vmatpush1.msra.mxu0 0.0
  %736 = vmatprep.subr.mxu0 0.0
  %737 = vmatpush1.msra.mxu0 0.0
  %738 = vmatprep.subr.mxu0 0.0
  %739 = vmatpush1.msra.mxu0 0.0
  %740 = vmatprep.subr.mxu0 0.0
  %741 = vmatpush1.msra.mxu0 0.0
  %742 = vmatprep.subr.mxu0 0.0
  %743 = vmatpush1.msra.mxu0 0.0
  %744 = vmatprep.subr.mxu0 0.0
  %745 = vmatpush1.msra.mxu0 0.0
  %746 = vmatprep.subr.mxu0 0.0
  %747 = vmatpush1.msra.mxu0 0.0
  %748 = vmatprep.subr.mxu0 0.0
  %749 = vmatpush1.msra.mxu0 0.0
  %750 = vmatprep.subr.mxu0 0.0
  %751 = vmatpush1.msra.mxu0 0.0
  %752 = vmatprep.subr.mxu0 0.0
  %753 = vmatpush1.msra.mxu0 0.0
  %754 = vmatprep.subr.mxu0 0.0
  %755 = vmatpush1.msra.mxu0 0.0
  %756 = vmatprep.subr.mxu0 0.0
  %757 = vmatpush1.msra.mxu0 0.0
  %758 = vmatprep.subr.mxu0 0.0
  %759 = vmatpush1.msra.mxu0 0.0
  %760 = vmatprep.subr.mxu0 0.0
  %761 = vmatpush1.msra.mxu0 0.0
  %762 = vmatprep.subr.mxu0 0.0
  %763 = vmatpush1.msra.mxu0 0.0
  %764 = vmatprep.subr.mxu0 0.0
  %765 = vmatpush1.msra.mxu0 0.0
  %766 = vmatprep.subr.mxu0 0.0
  %767 = vmatpush1.msra.mxu0 0.0
  %768 = vmatprep.subr.mxu0 0.0
  %769 = vmatpush1.msra.mxu0 0.0
  %770 = vmatprep.subr.mxu0 0.0
  %771 = vmatpush1.msra.mxu0 0.0
  %772 = vmatprep.subr.mxu0 0.0
  %773 = vmatpush1.msra.mxu0 0.0
  %774 = vmatprep.subr.mxu0 0.0
  %775 = vmatpush1.msra.mxu0 0.0
  %776 = vmatprep.subr.mxu0 0.0
  %777 = vmatpush1.msra.mxu0 0.0
  %778 = vmatprep.subr.mxu0 0.0
  %779 = vmatpush1.msra.mxu0 0.0
  %780 = vmatprep.subr.mxu0 0.0
  %781 = vmatpush1.msra.mxu0 0.0
  %782 = vmatprep.subr.mxu0 0.0
  %783 = vmatpush1.msra.mxu0 0.0
  %784 = vmatprep.mubr.f32.mxu0 0.0
  %785 = vmatmul.mubr.f32.gmra.mrb[0].mxu0 %v718
  %v786 = vpop.f32.mrb[0].mxu0
  %v787 = vadd.f32 0.0, %v786
  %v788 = vpop.f32.mrb[0].mxu0
  %789 = vdwg.mxu0
  %v791 = vsel %vm38, %v710, 0
  %793 = vmatprep.subr.mxu0 0.0
  %794 = vmatpush1.msra.mxu0 %v713
  %795 = vmatprep.subr.mxu0 0.0
  %796 = vmatpush1.msra.mxu0 %v714
  %797 = vmatprep.subr.mxu0 0.0
  %798 = vmatpush1.msra.mxu0 0.0
  %799 = vmatprep.subr.mxu0 0.0
  %800 = vmatpush1.msra.mxu0 0.0
  %801 = vmatprep.subr.mxu0 0.0
  %802 = vmatpush1.msra.mxu0 0.0
  %803 = vmatprep.subr.mxu0 0.0
  %804 = vmatpush1.msra.mxu0 0.0
  %805 = vmatprep.subr.mxu0 0.0
  %806 = vmatpush1.msra.mxu0 0.0
  %807 = vmatprep.subr.mxu0 0.0
  %808 = vmatpush1.msra.mxu0 0.0
  %809 = vmatprep.subr.mxu0 0.0
  %810 = vmatpush1.msra.mxu0 0.0
  %811 = vmatprep.subr.mxu0 0.0
  %812 = vmatpush1.msra.mxu0 0.0
  %813 = vmatprep.subr.mxu0 0.0
  %814 = vmatpush1.msra.mxu0 0.0
  %815 = vmatprep.subr.mxu0 0.0
  %816 = vmatpush1.msra.mxu0 0.0
  %817 = vmatprep.subr.mxu0 0.0
  %818 = vmatpush1.msra.mxu0 0.0
  %819 = vmatprep.subr.mxu0 0.0
  %820 = vmatpush1.msra.mxu0 0.0
  %821 = vmatprep.subr.mxu0 0.0
  %822 = vmatpush1.msra.mxu0 0.0
  %823 = vmatprep.subr.mxu0 0.0
  %824 = vmatpush1.msra.mxu0 0.0
  %825 = vmatprep.subr.mxu0 0.0
  %826 = vmatpush1.msra.mxu0 0.0
  %827 = vmatprep.subr.mxu0 0.0
  %828 = vmatpush1.msra.mxu0 0.0
  %829 = vmatprep.subr.mxu0 0.0
  %830 = vmatpush1.msra.mxu0 0.0
  %831 = vmatprep.subr.mxu0 0.0
  %832 = vmatpush1.msra.mxu0 0.0
  %833 = vmatprep.subr.mxu0 0.0
  %834 = vmatpush1.msra.mxu0 0.0
  %835 = vmatprep.subr.mxu0 0.0
  %836 = vmatpush1.msra.mxu0 0.0
  %837 = vmatprep.subr.mxu0 0.0
  %838 = vmatpush1.msra.mxu0 0.0
  %839 = vmatprep.subr.mxu0 0.0
  %840 = vmatpush1.msra.mxu0 0.0
  %841 = vmatprep.subr.mxu0 0.0
  %842 = vmatpush1.msra.mxu0 0.0
  %843 = vmatprep.subr.mxu0 0.0
  %844 = vmatpush1.msra.mxu0 0.0
  %845 = vmatprep.subr.mxu0 0.0
  %846 = vmatpush1.msra.mxu0 0.0
  %847 = vmatprep.subr.mxu0 0.0
  %848 = vmatpush1.msra.mxu0 0.0
  %849 = vmatprep.subr.mxu0 0.0
  %850 = vmatpush1.msra.mxu0 0.0
  %851 = vmatprep.subr.mxu0 0.0
  %852 = vmatpush1.msra.mxu0 0.0
  %853 = vmatprep.subr.mxu0 0.0
  %854 = vmatpush1.msra.mxu0 0.0
  %855 = vmatprep.subr.mxu0 0.0
  %856 = vmatpush1.msra.mxu0 0.0
  %857 = vmatprep.mubr.f32.mxu0 0.0
  %858 = vmatmul.mubr.f32.gmra.mrb[0].mxu0 %v791
  %v859 = vpop.f32.mrb[0].mxu0
  %v860 = vadd.f32 %v787, %v859
  %v861 = vpop.f32.mrb[0].mxu0
  %862 = vdwg.mxu0
  %v863 = vld [vmem:[%s4] sm:$0x1]
  %v865 = vlaneseq
  %v866 = vshrl.u32 %v865, 7
  %v867 = vsub.s32 0, %v866
  %v868 = vrot.slane %v863, %v867
  %v870 = vadd.f32 %v860, %v868
  %v871 = vmax.f32 %v870, 0.0
  %v872 = vld [vmem:[%s5] sm:$0xff]
  %v873 = vld [vmem:[%s5 + $0x8] sm:$0xff]
  %v874 = vld [vmem:[%s5 + $0x10] sm:$0xff]
  %v875 = vld [vmem:[%s5 + $0x18] sm:$0xff]
  %v876 = vld [vmem:[%s5 + $0x20] sm:$0xff]
  %v877 = vld [vmem:[%s5 + $0x28] sm:$0xff]
  %v878 = vld [vmem:[%s5 + $0x30] sm:$0xff]
  %v879 = vld [vmem:[%s5 + $0x38] sm:$0xff]
  %v880 = vld [vmem:[%s6] sm:$0x1]
  %v882 = vlaneseq
  %v883 = vshrl.u32 %v882, 7
  %v884 = vsub.s32 0, %v883
  %v885 = vrot.slane %v880, %v884
  %v888 = vsel %vm209, %v871, 0
  %890 = vmatprep.subr.mxu0 0.0
  %891 = vmatpush1.msra.mxu0 %v872
  %892 = vmatprep.subr.mxu0 0.0
  %893 = vmatpush1.msra.mxu0 %v873
  %894 = vmatprep.subr.mxu0 0.0
  %895 = vmatpush1.msra.mxu0 %v874
  %896 = vmatprep.subr.mxu0 0.0
  %897 = vmatpush1.msra.mxu0 %v875
  %898 = vmatprep.subr.mxu0 0.0
  %899 = vmatpush1.msra.mxu0 %v876
  %900 = vmatprep.subr.mxu0 0.0
  %901 = vmatpush1.msra.mxu0 %v877
  %902 = vmatprep.subr.mxu0 0.0
  %903 = vmatpush1.msra.mxu0 %v878
  %904 = vmatprep.subr.mxu0 0.0
  %905 = vmatpush1.msra.mxu0 %v879
  %906 = vmatprep.subr.mxu0 0.0
  %907 = vmatpush1.msra.mxu0 0.0
  %908 = vmatprep.subr.mxu0 0.0
  %909 = vmatpush1.msra.mxu0 0.0
  %910 = vmatprep.subr.mxu0 0.0
  %911 = vmatpush1.msra.mxu0 0.0
  %912 = vmatprep.subr.mxu0 0.0
  %913 = vmatpush1.msra.mxu0 0.0
  %914 = vmatprep.subr.mxu0 0.0
  %915 = vmatpush1.msra.mxu0 0.0
  %916 = vmatprep.subr.mxu0 0.0
  %917 = vmatpush1.msra.mxu0 0.0
  %918 = vmatprep.subr.mxu0 0.0
  %919 = vmatpush1.msra.mxu0 0.0
  %920 = vmatprep.subr.mxu0 0.0
  %921 = vmatpush1.msra.mxu0 0.0
  %922 = vmatprep.subr.mxu0 0.0
  %923 = vmatpush1.msra.mxu0 0.0
  %924 = vmatprep.subr.mxu0 0.0
  %925 = vmatpush1.msra.mxu0 0.0
  %926 = vmatprep.subr.mxu0 0.0
  %927 = vmatpush1.msra.mxu0 0.0
  %928 = vmatprep.subr.mxu0 0.0
  %929 = vmatpush1.msra.mxu0 0.0
  %930 = vmatprep.subr.mxu0 0.0
  %931 = vmatpush1.msra.mxu0 0.0
  %932 = vmatprep.subr.mxu0 0.0
  %933 = vmatpush1.msra.mxu0 0.0
  %934 = vmatprep.subr.mxu0 0.0
  %935 = vmatpush1.msra.mxu0 0.0
  %936 = vmatprep.subr.mxu0 0.0
  %937 = vmatpush1.msra.mxu0 0.0
  %938 = vmatprep.subr.mxu0 0.0
  %939 = vmatpush1.msra.mxu0 0.0
  %940 = vmatprep.subr.mxu0 0.0
  %941 = vmatpush1.msra.mxu0 0.0
  %942 = vmatprep.subr.mxu0 0.0
  %943 = vmatpush1.msra.mxu0 0.0
  %944 = vmatprep.subr.mxu0 0.0
  %945 = vmatpush1.msra.mxu0 0.0
  %946 = vmatprep.subr.mxu0 0.0
  %947 = vmatpush1.msra.mxu0 0.0
  %948 = vmatprep.subr.mxu0 0.0
  %949 = vmatpush1.msra.mxu0 0.0
  %950 = vmatprep.subr.mxu0 0.0
  %951 = vmatpush1.msra.mxu0 0.0
  %952 = vmatprep.subr.mxu0 0.0
  %953 = vmatpush1.msra.mxu0 0.0
  %954 = vmatprep.mubr.f32.mxu0 0.0
  %955 = vmatmul.mubr.f32.gmra.mrb[0].mxu0 %v888
  %v956 = vpop.f32.mrb[0].mxu0
  %v957 = vadd.f32 %v885, %v956
  %v958 = vpop.f32.mrb[0].mxu0
  %959 = vdwg.mxu0
  %v960 = vmax.f32 %v957, 0.0
  %v961 = vld [vmem:[%s7] sm:$0xff]
  %v962 = vld [vmem:[%s7 + $0x8] sm:$0xff]
  %v963 = vld [vmem:[%s7 + $0x10] sm:$0xff]
  %v964 = vld [vmem:[%s7 + $0x18] sm:$0xff]
  %v965 = vld [vmem:[%s8] sm:$0x1]
  %v967 = vlaneseq
  %v968 = vshrl.u32 %v967, 7
  %v969 = vsub.s32 0, %v968
  %v970 = vrot.slane %v965, %v969
  %v973 = vsel %vm295, %v960, 0
  %975 = vmatprep.subr.mxu0 0.0
  %976 = vmatpush1.msra.mxu0 %v961
  %977 = vmatprep.subr.mxu0 0.0
  %978 = vmatpush1.msra.mxu0 %v962
  %979 = vmatprep.subr.mxu0 0.0
  %980 = vmatpush1.msra.mxu0 %v963
  %981 = vmatprep.subr.mxu0 0.0
  %982 = vmatpush1.msra.mxu0 %v964
  %983 = vmatprep.subr.mxu0 0.0
  %984 = vmatpush1.msra.mxu0 0.0
  %985 = vmatprep.subr.mxu0 0.0
  %986 = vmatpush1.msra.mxu0 0.0
  %987 = vmatprep.subr.mxu0 0.0
  %988 = vmatpush1.msra.mxu0 0.0
  %989 = vmatprep.subr.mxu0 0.0
  %990 = vmatpush1.msra.mxu0 0.0
  %991 = vmatprep.subr.mxu0 0.0
  %992 = vmatpush1.msra.mxu0 0.0
  %993 = vmatprep.subr.mxu0 0.0
  %994 = vmatpush1.msra.mxu0 0.0
  %995 = vmatprep.subr.mxu0 0.0
  %996 = vmatpush1.msra.mxu0 0.0
  %997 = vmatprep.subr.mxu0 0.0
  %998 = vmatpush1.msra.mxu0 0.0
  %999 = vmatprep.subr.mxu0 0.0
  %1000 = vmatpush1.msra.mxu0 0.0
  %1001 = vmatprep.subr.mxu0 0.0
  %1002 = vmatpush1.msra.mxu0 0.0
  %1003 = vmatprep.subr.mxu0 0.0
  %1004 = vmatpush1.msra.mxu0 0.0
  %1005 = vmatprep.subr.mxu0 0.0
  %1006 = vmatpush1.msra.mxu0 0.0
  %1007 = vmatprep.subr.mxu0 0.0
  %1008 = vmatpush1.msra.mxu0 0.0
  %1009 = vmatprep.subr.mxu0 0.0
  %1010 = vmatpush1.msra.mxu0 0.0
  %1011 = vmatprep.subr.mxu0 0.0
  %1012 = vmatpush1.msra.mxu0 0.0
  %1013 = vmatprep.subr.mxu0 0.0
  %1014 = vmatpush1.msra.mxu0 0.0
  %1015 = vmatprep.subr.mxu0 0.0
  %1016 = vmatpush1.msra.mxu0 0.0
  %1017 = vmatprep.subr.mxu0 0.0
  %1018 = vmatpush1.msra.mxu0 0.0
  %1019 = vmatprep.subr.mxu0 0.0
  %1020 = vmatpush1.msra.mxu0 0.0
  %1021 = vmatprep.subr.mxu0 0.0
  %1022 = vmatpush1.msra.mxu0 0.0
  %1023 = vmatprep.subr.mxu0 0.0
  %1024 = vmatpush1.msra.mxu0 0.0
  %1025 = vmatprep.subr.mxu0 0.0
  %1026 = vmatpush1.msra.mxu0 0.0
  %1027 = vmatprep.subr.mxu0 0.0
  %1028 = vmatpush1.msra.mxu0 0.0
  %1029 = vmatprep.subr.mxu0 0.0
  %1030 = vmatpush1.msra.mxu0 0.0
  %1031 = vmatprep.subr.mxu0 0.0
  %1032 = vmatpush1.msra.mxu0 0.0
  %1033 = vmatprep.subr.mxu0 0.0
  %1034 = vmatpush1.msra.mxu0 0.0
  %1035 = vmatprep.subr.mxu0 0.0
  %1036 = vmatpush1.msra.mxu0 0.0
  %1037 = vmatprep.subr.mxu0 0.0
  %1038 = vmatpush1.msra.mxu0 0.0
  %1039 = vmatprep.mubr.f32.mxu0 0.0
  %1040 = vmatmul.mubr.f32.gmra.mrb[0].mxu0 %v973
  %v1041 = vpop.f32.mrb[0].mxu0
  %v1042 = vadd.f32 %v970, %v1041
  %v1043 = vpop.f32.mrb[0].mxu0
  %1044 = vdwg.mxu0
  %s1045 = scalar_lea.vmem %s9, 16
  %1046 = vst.msk [vmem:[%s1045] sm:$0xff] %vm369, %v1042
  // Predicated region
  $region38: #{joint_relu_mlp.1} parent=0 // pred_check
    _
  $region39: #{joint_relu_mlp.1} parent=0 // pred_check_branch
    %1048 = sbr.rel (0) target = $region41
  $region40: #{joint_relu_mlp.1} parent=0 // pred_region
    _
  $region41: #{joint_relu_mlp.1} parent=0 // pred_fallthru
    _
  // Predicated region
  $region42: #{joint_relu_mlp.1} parent=0 // pred_check
    _
  $region43: #{joint_relu_mlp.1} parent=0 // pred_check_branch
    %1050 = sbr.rel (0) target = $region45
  $region44: #{joint_relu_mlp.1} parent=0 // pred_region
    _
  $region45: #{joint_relu_mlp.1} parent=0 // pred_fallthru
    _

</llo_original>
